<compile_context>
chip_gen: v5e
topology: v5e:2x2
jax: 0.10.0
libtpu: 0.0.40
codegen_flags: <defaults>
</compile_context>

<pallas_src>
import functools
import math

import jax
import jax.numpy as jnp
from jax.experimental import pallas as pl
from jax.experimental.pallas import tpu as pltpu

_LANE = 128
_SUBLANE = 8


def _round_up(v, m):
    return (v + m - 1) // m * m


def _leaky_relu(h, negative_slope=0.01):
    # F.leaky_relu default negative_slope = 0.01
    return jnp.where(h > 0, h, negative_slope * h)


def _layer_meta(n_features, z_dim):
    """Static (Python-int) padded layer layout for the packed weight buffer."""
    fp = _round_up(n_features, _LANE)
    zp = _round_up(z_dim, _LANE)
    p200, p100, p50 = 256, 128, 128
    # (name, true_in, true_out, padded_in, padded_out) -- kernel order
    specs = (
        ("en1", n_features, 200, fp, p200),
        ("en2", 200, 100, p200, p100),
        ("en3", 100, 50, p100, p50),
        ("head", 50, 2 * z_dim, p50, 2 * zp),   # fused fc_mu | fc_var
        ("de1", z_dim, 50, zp, p50),
        ("de2", 50, 100, p50, p100),
        ("de3", 100, 200, p100, p200),
        ("de4", 200, n_features, p200, fp),
    )
    # TODO(synk): column-compact the packed weight buffer (per-layer column
    # offsets) and K/N-tile en1/de4 once fp grows enough that the resident
    # buffer threatens v7x's 64 MiB VMEM; negligible at current sizes.
    w_cols = max(s[4] for s in specs)
    layers = []
    off = 0
    for i, s in enumerate(specs):
        layers.append((off, s[3], s[4], i))     # row offset, pad_in, pad_out, bias row
        off += s[3]
    w_rows = off
    return specs, tuple(layers), w_rows, w_cols, fp, zp


def _make_kernel(layers, zp):
    """Kernel closure over the static packed-weight layout."""

    def kernel(x_ref, eps_ref, w_ref, b_ref, recon_ref, muvar_ref):
        b_full = b_ref[...]                                    # (n_layers, w_cols) f32

        def lin(h, layer):
            off, din, dout, brow = layer
            w = w_ref[off:off + din, :dout]                    # bf16 weight tile
            acc = jnp.dot(h.astype(w.dtype), w,
                          preferred_element_type=jnp.float32)  # MXU, f32 acc
            return acc + b_full[brow:brow + 1, :dout]          # f32 bias add

        def lin_act(h, layer):
            # f32 accumulate + leaky_relu, then keep the activation in bf16 so
            # intermediates stay half-width (the next dot casts to bf16 anyway,
            # so the math is unchanged).
            return _leaky_relu(lin(h, layer)).astype(jnp.bfloat16)

        x = x_ref[...]

        # ---- encode ----
        h1 = lin_act(x, layers[0])
        h2 = lin_act(h1, layers[1])
        h3 = lin(h2, layers[2]).astype(jnp.bfloat16)           # no activation
        head = lin(h3, layers[3])                              # [mu | log_var], f32

        # Early store: end head's (TB, 2*Zp) f32 live range before decode.
        muvar_ref[...] = head
        mu = head[:, :zp]
        log_var = head[:, zp:]

        # ---- reparameterize (eps supplied from outside the kernel) ----
        std = jnp.exp(0.5 * log_var)
        z = eps_ref[...] * std + mu

        # ---- decode ----
        h4 = lin_act(z, layers[4])
        h5 = lin_act(h4, layers[5])
        h6 = lin_act(h5, layers[6])
        recon_ref[...] = lin(h6, layers[7])                    # no activation

    return kernel


def _linear_init(key, din, dout):
    """nn.Linear-style init (uniform +-1/sqrt(fan_in)), stored [in, out]."""
    kw, kb = jax.random.split(key)
    bound = 1.0 / math.sqrt(din)
    w = jax.random.uniform(kw, (din, dout), jnp.float32, -bound, bound)
    b = jax.random.uniform(kb, (dout,), jnp.float32, -bound, bound)
    return w, b


def build_vae_params(key, n_features, z_dim, w_dtype=jnp.bfloat16):
    """Pack all 9 Linear layers into one weight buffer + one bias buffer.

    Padded rows/columns are zero-filled -- the kernel relies on this invariant
    so padded lanes never leak into real outputs.  Returns (w_all, b_all, raw)
    where `raw` holds the (bf16-rounded, unpadded) per-layer params used for a
    pure-JAX reference check.
    """
    specs, layers, w_rows, w_cols, fp, zp = _layer_meta(n_features, z_dim)

    names = ("en1", "en2", "en3", "fc_mu", "fc_var", "de1", "de2", "de3", "de4")
    dims = {
        "en1": (n_features, 200), "en2": (200, 100), "en3": (100, 50),
        "fc_mu": (50, z_dim), "fc_var": (50, z_dim),
        "de1": (z_dim, 50), "de2": (50, 100), "de3": (100, 200),
        "de4": (200, n_features),
    }
    keys = jax.random.split(key, len(names))
    raw = {}
    for name, k in zip(names, keys):
        din, dout = dims[name]
        w, b = _linear_init(k, din, dout)
        # keep the same rounding the kernel sees (weights live in bf16)
        raw[name] = (w.astype(w_dtype).astype(jnp.float32), b)

    w_all = jnp.zeros((w_rows, w_cols), w_dtype)
    b_all = jnp.zeros((len(specs), w_cols), jnp.float32)

    def place(w_all, b_all, idx, w, b):
        off, _, _, brow = layers[idx]
        w_all = w_all.at[off:off + w.shape[0], :w.shape[1]].set(w.astype(w_dtype))
        b_all = b_all.at[brow, :b.shape[0]].set(b.astype(jnp.float32))
        return w_all, b_all

    order = ("en1", "en2", "en3", None, "de1", "de2", "de3", "de4")
    for idx, name in enumerate(order):
        if name is None:
            # fused head: [fc_mu | fc_var], each padded to zp lanes
            w_mu, b_mu = raw["fc_mu"]
            w_var, b_var = raw["fc_var"]
            w_head = jnp.zeros((50, 2 * zp), jnp.float32)
            w_head = w_head.at[:, :z_dim].set(w_mu)
            w_head = w_head.at[:, zp:zp + z_dim].set(w_var)
            b_head = jnp.zeros((2 * zp,), jnp.float32)
            b_head = b_head.at[:z_dim].set(b_mu)
            b_head = b_head.at[zp:zp + z_dim].set(b_var)
            w_all, b_all = place(w_all, b_all, idx, w_head, b_head)
        else:
            w, b = raw[name]
            w_all, b_all = place(w_all, b_all, idx, w, b)

    return w_all, b_all, raw


def _pick_tile(batch, tile_batch):
    """Pick (tile_rows, padded_batch) per the review's tiling policy."""
    m_pad8 = _round_up(max(batch, 1), _SUBLANE)
    if tile_batch is not None:
        tb = _round_up(int(tile_batch), _SUBLANE)
    elif m_pad8 <= 128:
        # tiny batch: single tile padded only to the sublane multiple (8);
        # MXU accepts M < 128 and this avoids up to 16x padding waste.
        tb = m_pad8
    else:
        desired = 1024 if batch >= 2048 else 512
        # clamp so the grid always has >= 2 steps (v7x megacore gets both TCs busy)
        half = _round_up((m_pad8 + 1) // 2, _SUBLANE)
        tb = min(desired, half)
    b_pad = _round_up(m_pad8, tb)
    return tb, b_pad


@functools.partial(jax.jit, static_argnames=("tile_batch",))
def vanilla_vae_forward(x, eps, w_all, b_all, tile_batch=None):
    """Forward pass: returns (reconstruction, mu, log_var), matching PyTorch."""
    batch, n_features = x.shape
    z_dim = eps.shape[1]
    specs, layers, w_rows, w_cols, fp, zp = _layer_meta(n_features, z_dim)

    tb, b_pad = _pick_tile(batch, tile_batch)
    grid_steps = b_pad // tb

    x_p = jnp.zeros((b_pad, fp), jnp.float32).at[:batch, :n_features].set(
        x.astype(jnp.float32))
    eps_p = jnp.zeros((b_pad, zp), jnp.float32).at[:batch, :z_dim].set(
        eps.astype(jnp.float32))

    kernel = _make_kernel(layers, zp)
    n_bias_rows = b_all.shape[0]

    flops = 2 * b_pad * sum(s[3] * s[4] for s in specs)
    bytes_accessed = int(
        x_p.size * 4 + eps_p.size * 4
        + w_all.size * w_all.dtype.itemsize + b_all.size * 4
        + b_pad * (fp + 2 * zp) * 4)
    cost = pl.CostEstimate(flops=flops, transcendentals=b_pad * zp,
                           bytes_accessed=bytes_accessed)

    # --- VMEM budget: resident params + n-buffered IO tiles + intermediates ---
    nbuf = 3 if grid_steps >= 3 else 2          # deeper buffering only when useful
    w_bytes = w_all.size * w_all.dtype.itemsize + b_all.size * 4
    io_bytes = nbuf * tb * (fp + zp + fp + 2 * zp) * 4
    act_bytes = tb * ((256 + 128 + 128 + 128 + 128 + 256) * 2       # bf16 h1..h6
                      + (2 * zp + 4 * zp + fp) * 4)                 # f32 head/mu/std/z/out
    vmem_needed = w_bytes + io_bytes + act_bytes
    try:
        vmem_cap = int(pltpu.get_tpu_info().vmem_capacity_bytes)
    except Exception:
        vmem_cap = 64 * 2 ** 20                 # conservative (v7x per-core)
    # headroom: <=48 MiB on v7x (64 MiB), <=96 MiB on v5e/v6e (128 MiB)
    budget = vmem_cap - max(16 * 2 ** 20, vmem_cap // 4)
    vmem_limit = int(min(budget, max(32 * 2 ** 20, 2 * vmem_needed)))

    def tile_spec(cols):
        if nbuf > 2:
            return pl.BlockSpec((tb, cols), lambda i: (i, 0),
                                pipeline_mode=pl.Buffered(nbuf))
        return pl.BlockSpec((tb, cols), lambda i: (i, 0))

    recon_p, muvar_p = pl.pallas_call(
        kernel,
        grid=(grid_steps,),
        in_specs=[
            tile_spec(fp),                                          # x tile
            tile_spec(zp),                                          # eps tile
            pl.BlockSpec((w_rows, w_cols), lambda i: (0, 0)),       # packed weights (resident)
            pl.BlockSpec((n_bias_rows, w_cols), lambda i: (0, 0)),  # packed biases (resident)
        ],
        out_specs=(
            tile_spec(fp),                                          # reconstruction
            tile_spec(2 * zp),                                      # [mu | log_var]
        ),
        out_shape=(
            jax.ShapeDtypeStruct((b_pad, fp), jnp.float32),
            jax.ShapeDtypeStruct((b_pad, 2 * zp), jnp.float32),
        ),
        compiler_params=pltpu.CompilerParams(
            dimension_semantics=("parallel",),
            vmem_limit_bytes=vmem_limit,
        ),
        cost_estimate=cost,
    )(x_p, eps_p, w_all, b_all)

    recon = recon_p[:batch, :n_features]
    mu = muvar_p[:batch, :z_dim]
    log_var = muvar_p[:batch, zp:zp + z_dim]
    return recon, mu, log_var


def _reference_forward(x, eps, raw):
    """Pure-JAX f32 reference (same bf16-rounded weights) for sanity check."""
    def lin(h, name):
        w, b = raw[name]
        return h @ w + b

    h1 = _leaky_relu(lin(x, "en1"))
    h2 = _leaky_relu(lin(h1, "en2"))
    h3 = lin(h2, "en3")
    mu = lin(h3, "fc_mu")
    log_var = lin(h3, "fc_var")
    z = eps * jnp.exp(0.5 * log_var) + mu
    h4 = _leaky_relu(lin(z, "de1"))
    h5 = _leaky_relu(lin(h4, "de2"))
    h6 = _leaky_relu(lin(h5, "de3"))
    return lin(h6, "de4"), mu, log_var


if __name__ == "__main__":
    key = jax.random.PRNGKey(0)
    k_params, k_x, k_eps = jax.random.split(key, 3)

    n_features = 32
    z_dim = 8
    w_all, b_all, raw = build_vae_params(k_params, n_features, z_dim)

    # batch=8 exercises the small-batch (single 8-row tile) path;
    # batch=192 exercises the clamped-tile, >=2-grid-step (v7x megacore) path.
    for batch in (8, 192):
        kx = jax.random.fold_in(k_x, batch)
        ke = jax.random.fold_in(k_eps, batch)
        x = jax.random.normal(kx, (batch, n_features), dtype=jnp.float32)
        # eps ~ N(0, 1) generated deterministically outside the kernel
        eps = jax.random.normal(ke, (batch, z_dim), dtype=jnp.float32)

        recon, mu, log_var = vanilla_vae_forward(x, eps, w_all, b_all)
        jax.block_until_ready((recon, mu, log_var))

        assert recon.shape == (batch, n_features)
        assert mu.shape == (batch, z_dim)
        assert log_var.shape == (batch, z_dim)

        ref_recon, ref_mu, ref_logvar = _reference_forward(x, eps, raw)
        err = max(
            float(jnp.max(jnp.abs(recon - ref_recon))),
            float(jnp.max(jnp.abs(mu - ref_mu))),
            float(jnp.max(jnp.abs(log_var - ref_logvar))),
        )
        assert err < 1e-1, f"kernel vs reference mismatch (batch={batch}): {err}"

    print("KERNEL_OK")
</pallas_src>

<mosaic_0001>
module attributes {stable_mosaic.version = 11 : i64} {
  func.func @kernel(%arg0: i32, %arg1: memref<8x128xf32, #tpu.memory_space<vmem>>, %arg2: memref<8x128xf32, #tpu.memory_space<vmem>>, %arg3: memref<1280x256xbf16, #tpu.memory_space<vmem>>, %arg4: memref<8x256xf32, #tpu.memory_space<vmem>>, %arg5: memref<8x128xf32, #tpu.memory_space<vmem>>, %arg6: memref<8x256xf32, #tpu.memory_space<vmem>>) attributes {dimension_semantics = [#tpu.dimension_semantics<parallel>], iteration_bounds = array<i64: 1>, scalar_prefetch = 0 : i64, scratch_operands = 0 : i64, tpu.core_type = #tpu.core_type<tc>, window_params = [{transform_indices = @transform_0, window_bounds = array<i64: 8, 128>}, {transform_indices = @transform_1, window_bounds = array<i64: 8, 128>}, {pipeline_mode = #tpu.pipeline_mode<synchronous>, transform_indices = @transform_2, window_bounds = array<i64: 1280, 256>}, {pipeline_mode = #tpu.pipeline_mode<synchronous>, transform_indices = @transform_3, window_bounds = array<i64: 8, 256>}, {transform_indices = @transform_4, window_bounds = array<i64: 8, 128>}, {transform_indices = @transform_5, window_bounds = array<i64: 8, 256>}]} {
    %c0 = arith.constant 0 : index
    %c0_0 = arith.constant 0 : index
    %0 = vector.load %arg4[%c0, %c0_0] : memref<8x256xf32, #tpu.memory_space<vmem>>, vector<8x256xf32>
    %c0_1 = arith.constant 0 : index
    %c0_2 = arith.constant 0 : index
    %1 = vector.load %arg1[%c0_1, %c0_2] : memref<8x128xf32, #tpu.memory_space<vmem>>, vector<8x128xf32>
    %c0_3 = arith.constant 0 : index
    %c0_4 = arith.constant 0 : index
    %2 = vector.load %arg3[%c0_3, %c0_4] : memref<1280x256xbf16, #tpu.memory_space<vmem>>, vector<128x256xbf16>
    %3 = arith.truncf %1 : vector<8x128xf32> to vector<8x128xbf16>
    %cst = arith.constant dense<0.000000e+00> : vector<8x256xf32>
    %4 = tpu.matmul %3, %2, %cst {dimension_numbers = #tpu.dot_dimension_numbers<[1], [0], [0], [1], [0, 0, 1, 1], [], []>} : vector<8x128xbf16>, vector<128x256xbf16>, vector<8x256xf32> -> vector<8x256xf32>
    %5 = vector.extract_strided_slice %0 {offsets = [0, 0], sizes = [1, 256], strides = [1, 1]} : vector<8x256xf32> to vector<1x256xf32>
    %6 = vector.broadcast %5 : vector<1x256xf32> to vector<8x256xf32>
    %7 = arith.addf %4, %6 : vector<8x256xf32>
    %cst_5 = arith.constant 0.000000e+00 : f32
    %8 = vector.broadcast %cst_5 : f32 to vector<8x256xf32>
    %9 = arith.cmpf ogt, %7, %8 : vector<8x256xf32>
    %cst_6 = arith.constant 0.00999999977 : f32
    %10 = vector.broadcast %cst_6 : f32 to vector<8x256xf32>
    %11 = arith.mulf %10, %7 : vector<8x256xf32>
    %12 = arith.select %9, %7, %11 : vector<8x256xi1>, vector<8x256xf32>
    %13 = arith.truncf %12 : vector<8x256xf32> to vector<8x256xbf16>
    %c128 = arith.constant 128 : index
    %c0_7 = arith.constant 0 : index
    %14 = vector.load %arg3[%c128, %c0_7] : memref<1280x256xbf16, #tpu.memory_space<vmem>>, vector<256x128xbf16>
    %cst_8 = arith.constant dense<0.000000e+00> : vector<8x128xf32>
    %15 = tpu.matmul %13, %14, %cst_8 {dimension_numbers = #tpu.dot_dimension_numbers<[1], [0], [0], [1], [0, 0, 1, 1], [], []>} : vector<8x256xbf16>, vector<256x128xbf16>, vector<8x128xf32> -> vector<8x128xf32>
    %16 = vector.extract_strided_slice %0 {offsets = [1, 0], sizes = [1, 128], strides = [1, 1]} : vector<8x256xf32> to vector<1x128xf32>
    %17 = vector.broadcast %16 : vector<1x128xf32> to vector<8x128xf32>
    %18 = arith.addf %15, %17 : vector<8x128xf32>
    %cst_9 = arith.constant 0.000000e+00 : f32
    %19 = vector.broadcast %cst_9 : f32 to vector<8x128xf32>
    %20 = arith.cmpf ogt, %18, %19 : vector<8x128xf32>
    %cst_10 = arith.constant 0.00999999977 : f32
    %21 = vector.broadcast %cst_10 : f32 to vector<8x128xf32>
    %22 = arith.mulf %21, %18 : vector<8x128xf32>
    %23 = arith.select %20, %18, %22 : vector<8x128xi1>, vector<8x128xf32>
    %24 = arith.truncf %23 : vector<8x128xf32> to vector<8x128xbf16>
    %c384 = arith.constant 384 : index
    %c0_11 = arith.constant 0 : index
    %25 = vector.load %arg3[%c384, %c0_11] : memref<1280x256xbf16, #tpu.memory_space<vmem>>, vector<128x128xbf16>
    %cst_12 = arith.constant dense<0.000000e+00> : vector<8x128xf32>
    %26 = tpu.matmul %24, %25, %cst_12 {dimension_numbers = #tpu.dot_dimension_numbers<[1], [0], [0], [1], [0, 0, 1, 1], [], []>} : vector<8x128xbf16>, vector<128x128xbf16>, vector<8x128xf32> -> vector<8x128xf32>
    %27 = vector.extract_strided_slice %0 {offsets = [2, 0], sizes = [1, 128], strides = [1, 1]} : vector<8x256xf32> to vector<1x128xf32>
    %28 = vector.broadcast %27 : vector<1x128xf32> to vector<8x128xf32>
    %29 = arith.addf %26, %28 : vector<8x128xf32>
    %30 = arith.truncf %29 : vector<8x128xf32> to vector<8x128xbf16>
    %c512 = arith.constant 512 : index
    %c0_13 = arith.constant 0 : index
    %31 = vector.load %arg3[%c512, %c0_13] : memref<1280x256xbf16, #tpu.memory_space<vmem>>, vector<128x256xbf16>
    %cst_14 = arith.constant dense<0.000000e+00> : vector<8x256xf32>
    %32 = tpu.matmul %30, %31, %cst_14 {dimension_numbers = #tpu.dot_dimension_numbers<[1], [0], [0], [1], [0, 0, 1, 1], [], []>} : vector<8x128xbf16>, vector<128x256xbf16>, vector<8x256xf32> -> vector<8x256xf32>
    %33 = vector.extract_strided_slice %0 {offsets = [3, 0], sizes = [1, 256], strides = [1, 1]} : vector<8x256xf32> to vector<1x256xf32>
    %34 = vector.broadcast %33 : vector<1x256xf32> to vector<8x256xf32>
    %35 = arith.addf %32, %34 : vector<8x256xf32>
    %c0_15 = arith.constant 0 : index
    %c0_16 = arith.constant 0 : index
    %36 = vector.load %arg6[%c0_15, %c0_16] : memref<8x256xf32, #tpu.memory_space<vmem>>, vector<8x256xf32>
    tpu.vector_store %arg6[%c0_15, %c0_16], %35 {strides = array<i32>} : memref<8x256xf32, #tpu.memory_space<vmem>>, vector<8x256xf32>,
    %37 = vector.extract_strided_slice %35 {offsets = [0, 0], sizes = [8, 128], strides = [1, 1]} : vector<8x256xf32> to vector<8x128xf32>
    %38 = vector.extract_strided_slice %35 {offsets = [0, 128], sizes = [8, 128], strides = [1, 1]} : vector<8x256xf32> to vector<8x128xf32>
    %cst_17 = arith.constant 5.000000e-01 : f32
    %39 = vector.broadcast %cst_17 : f32 to vector<8x128xf32>
    %40 = arith.mulf %39, %38 : vector<8x128xf32>
    %41 = math.exp %40 : vector<8x128xf32>
    %c0_18 = arith.constant 0 : index
    %c0_19 = arith.constant 0 : index
    %42 = vector.load %arg2[%c0_18, %c0_19] : memref<8x128xf32, #tpu.memory_space<vmem>>, vector<8x128xf32>
    %43 = arith.mulf %42, %41 : vector<8x128xf32>
    %44 = arith.addf %43, %37 : vector<8x128xf32>
    %c640 = arith.constant 640 : index
    %c0_20 = arith.constant 0 : index
    %45 = vector.load %arg3[%c640, %c0_20] : memref<1280x256xbf16, #tpu.memory_space<vmem>>, vector<128x128xbf16>
    %46 = arith.truncf %44 : vector<8x128xf32> to vector<8x128xbf16>
    %cst_21 = arith.constant dense<0.000000e+00> : vector<8x128xf32>
    %47 = tpu.matmul %46, %45, %cst_21 {dimension_numbers = #tpu.dot_dimension_numbers<[1], [0], [0], [1], [0, 0, 1, 1], [], []>} : vector<8x128xbf16>, vector<128x128xbf16>, vector<8x128xf32> -> vector<8x128xf32>
    %48 = vector.extract_strided_slice %0 {offsets = [4, 0], sizes = [1, 128], strides = [1, 1]} : vector<8x256xf32> to vector<1x128xf32>
    %49 = vector.broadcast %48 : vector<1x128xf32> to vector<8x128xf32>
    %50 = arith.addf %47, %49 : vector<8x128xf32>
    %cst_22 = arith.constant 0.000000e+00 : f32
    %51 = vector.broadcast %cst_22 : f32 to vector<8x128xf32>
    %52 = arith.cmpf ogt, %50, %51 : vector<8x128xf32>
    %cst_23 = arith.constant 0.00999999977 : f32
    %53 = vector.broadcast %cst_23 : f32 to vector<8x128xf32>
    %54 = arith.mulf %53, %50 : vector<8x128xf32>
    %55 = arith.select %52, %50, %54 : vector<8x128xi1>, vector<8x128xf32>
    %56 = arith.truncf %55 : vector<8x128xf32> to vector<8x128xbf16>
    %c768 = arith.constant 768 : index
    %c0_24 = arith.constant 0 : index
    %57 = vector.load %arg3[%c768, %c0_24] : memref<1280x256xbf16, #tpu.memory_space<vmem>>, vector<128x128xbf16>
    %cst_25 = arith.constant dense<0.000000e+00> : vector<8x128xf32>
    %58 = tpu.matmul %56, %57, %cst_25 {dimension_numbers = #tpu.dot_dimension_numbers<[1], [0], [0], [1], [0, 0, 1, 1], [], []>} : vector<8x128xbf16>, vector<128x128xbf16>, vector<8x128xf32> -> vector<8x128xf32>
    %59 = vector.extract_strided_slice %0 {offsets = [5, 0], sizes = [1, 128], strides = [1, 1]} : vector<8x256xf32> to vector<1x128xf32>
    %60 = vector.broadcast %59 : vector<1x128xf32> to vector<8x128xf32>
    %61 = arith.addf %58, %60 : vector<8x128xf32>
    %cst_26 = arith.constant 0.000000e+00 : f32
    %62 = vector.broadcast %cst_26 : f32 to vector<8x128xf32>
    %63 = arith.cmpf ogt, %61, %62 : vector<8x128xf32>
    %cst_27 = arith.constant 0.00999999977 : f32
    %64 = vector.broadcast %cst_27 : f32 to vector<8x128xf32>
    %65 = arith.mulf %64, %61 : vector<8x128xf32>
    %66 = arith.select %63, %61, %65 : vector<8x128xi1>, vector<8x128xf32>
    %67 = arith.truncf %66 : vector<8x128xf32> to vector<8x128xbf16>
    %c896 = arith.constant 896 : index
    %c0_28 = arith.constant 0 : index
    %68 = vector.load %arg3[%c896, %c0_28] : memref<1280x256xbf16, #tpu.memory_space<vmem>>, vector<128x256xbf16>
    %cst_29 = arith.constant dense<0.000000e+00> : vector<8x256xf32>
    %69 = tpu.matmul %67, %68, %cst_29 {dimension_numbers = #tpu.dot_dimension_numbers<[1], [0], [0], [1], [0, 0, 1, 1], [], []>} : vector<8x128xbf16>, vector<128x256xbf16>, vector<8x256xf32> -> vector<8x256xf32>
    %70 = vector.extract_strided_slice %0 {offsets = [6, 0], sizes = [1, 256], strides = [1, 1]} : vector<8x256xf32> to vector<1x256xf32>
    %71 = vector.broadcast %70 : vector<1x256xf32> to vector<8x256xf32>
    %72 = arith.addf %69, %71 : vector<8x256xf32>
    %cst_30 = arith.constant 0.000000e+00 : f32
    %73 = vector.broadcast %cst_30 : f32 to vector<8x256xf32>
    %74 = arith.cmpf ogt, %72, %73 : vector<8x256xf32>
    %cst_31 = arith.constant 0.00999999977 : f32
    %75 = vector.broadcast %cst_31 : f32 to vector<8x256xf32>
    %76 = arith.mulf %75, %72 : vector<8x256xf32>
    %77 = arith.select %74, %72, %76 : vector<8x256xi1>, vector<8x256xf32>
    %78 = arith.truncf %77 : vector<8x256xf32> to vector<8x256xbf16>
    %c1024 = arith.constant 1024 : index
    %c0_32 = arith.constant 0 : index
    %79 = vector.load %arg3[%c1024, %c0_32] : memref<1280x256xbf16, #tpu.memory_space<vmem>>, vector<256x128xbf16>
    %cst_33 = arith.constant dense<0.000000e+00> : vector<8x128xf32>
    %80 = tpu.matmul %78, %79, %cst_33 {dimension_numbers = #tpu.dot_dimension_numbers<[1], [0], [0], [1], [0, 0, 1, 1], [], []>} : vector<8x256xbf16>, vector<256x128xbf16>, vector<8x128xf32> -> vector<8x128xf32>
    %81 = vector.extract_strided_slice %0 {offsets = [7, 0], sizes = [1, 128], strides = [1, 1]} : vector<8x256xf32> to vector<1x128xf32>
    %82 = vector.broadcast %81 : vector<1x128xf32> to vector<8x128xf32>
    %83 = arith.addf %80, %82 : vector<8x128xf32>
    %c0_34 = arith.constant 0 : index
    %c0_35 = arith.constant 0 : index
    %84 = vector.load %arg5[%c0_34, %c0_35] : memref<8x128xf32, #tpu.memory_space<vmem>>, vector<8x128xf32>
    tpu.vector_store %arg5[%c0_34, %c0_35], %83 {strides = array<i32>} : memref<8x128xf32, #tpu.memory_space<vmem>>, vector<8x128xf32>,
    return
  }
  func.func @transform_0(%arg0: i32) -> (i32, i32) {
    %c0_i32 = arith.constant 0 : i32
    %c0_i32_0 = arith.constant 0 : i32
    return %arg0, %c0_i32 : i32, i32
  }
  func.func @transform_1(%arg0: i32) -> (i32, i32) {
    %c0_i32 = arith.constant 0 : i32
    %c0_i32_0 = arith.constant 0 : i32
    return %arg0, %c0_i32 : i32, i32
  }
  func.func @transform_2(%arg0: i32) -> (i32, i32) {
    %c0_i32 = arith.constant 0 : i32
    %c0_i32_0 = arith.constant 0 : i32
    %c0_i32_1 = arith.constant 0 : i32
    return %c0_i32, %c0_i32_0 : i32, i32
  }
  func.func @transform_3(%arg0: i32) -> (i32, i32) {
    %c0_i32 = arith.constant 0 : i32
    %c0_i32_0 = arith.constant 0 : i32
    %c0_i32_1 = arith.constant 0 : i32
    return %c0_i32, %c0_i32_0 : i32, i32
  }
  func.func @transform_4(%arg0: i32) -> (i32, i32) {
    %c0_i32 = arith.constant 0 : i32
    %c0_i32_0 = arith.constant 0 : i32
    return %arg0, %c0_i32 : i32, i32
  }
  func.func @transform_5(%arg0: i32) -> (i32, i32) {
    %c0_i32 = arith.constant 0 : i32
    %c0_i32_0 = arith.constant 0 : i32
    return %arg0, %c0_i32 : i32, i32
  }
}

</mosaic_0001>

<llo_original>
// kernel: vanilla_vae_forward.1
$region0: #{vanilla_vae_forward.1}
  #allocation0 [shape = 'u32[]', space=smem, size = 0x4, offset = 0x4, fixed_abs, tag = 'smem constant byte address 0x4 - core index']
  #allocation1 [shape = 'u32[72,128]{1,0:T(1,128)}', space=vmem, size = 0x9000, scoped, tag = 'internal scratch']
  %s0 = inlined_call_operand.vmem [shape: f32[8,128], index: 0, kind: input, shape index: {}]
  %s1 = inlined_call_operand.vmem [shape: f32[8,128], index: 1, kind: input, shape index: {}]
  %s2 = inlined_call_operand.hbm [shape: bf16[1280,256], index: 2, kind: input, shape index: {}]
  %s3 = inlined_call_operand.vmem [shape: f32[8,256], index: 3, kind: input, shape index: {}]
  %s4 = inlined_call_operand.hbm [shape: f32[8,128], index: 4, kind: output, shape index: {0}]
  %s5 = inlined_call_operand.vmem [shape: f32[8,256], index: 5, kind: output, shape index: {1}]
  %6 = xla_tuple %s4, %s5
  %s7 = sld [smem:[#allocation0]]
  $region38: #{vanilla_vae_forward.1} parent=0
    _
  %s9 = ssub.s32 1, %s7
  %s10 = scalar_select 0, %s9, %s7
  $region1: #{vanilla_vae_forward.1} parent=0
    #allocation2 [shape = 'u8[655360]{0}', space=vmem, size = 0xa0000, scoped, tag = 'input window, operand 2, single buffered']
    #allocation3 [shape = 's32[1]{0}', space=sflag, size = 0x4, scoped, tag = 'scoped memory for vanilla_vae_forward.1']
    #allocation4 [shape = 's32[1]{0}', space=sflag, size = 0x4, scoped, tag = 'scoped memory for vanilla_vae_forward.1']
    #allocation5 [shape = 'u8[4096]{0}', space=vmem, size = 0x1000, scoped, tag = 'output window, operand 0, single buffered']
    %11 = vsyncpa [#allocation3], 0
    %12 = vsyncpa [#allocation4], 0
    // Predicated region
    $region2: #{vanilla_vae_forward.1} parent=1 // pred_check
      _
    $region3: #{vanilla_vae_forward.1} parent=1 // pred_check_branch
      %14 = sbr.rel (0) target = $region5
    $region4: #{vanilla_vae_forward.1} parent=1 // pred_region
      _
    $region5: #{vanilla_vae_forward.1} parent=1 // pred_fallthru
      _
    // Predicated region
    $region6: #{vanilla_vae_forward.1} parent=1 // pred_check
      _
    $region7: #{vanilla_vae_forward.1} parent=1 // pred_check_branch
      %16 = sbr.rel (0) target = $region9
    $region8: #{vanilla_vae_forward.1} parent=1 // pred_region
      _
    $region9: #{vanilla_vae_forward.1} parent=1 // pred_fallthru
      _
    // Predicated region
    $region10: #{vanilla_vae_forward.1} parent=1 // pred_check
      _
    $region11: #{vanilla_vae_forward.1} parent=1 // pred_check_branch
      %18 = sbr.rel (0) target = $region13
    $region12: #{vanilla_vae_forward.1} parent=1 // pred_region
      %20 = vsyncadd [#allocation3], 0
      %s21 = sshll.u32 %s2, 4
      %s22 = int_to_ptr.hbm [resolvable:$true] %s21
      %s23 = sshll.u32 [#allocation2], 4
      %s24 = int_to_ptr.vmem [resolvable:$true] %s23
      %29 = dma.hbm_to_vmem [thread:$0]  %s22, 20480, %s24, [#allocation3], 128, 128, 8
    $region13: #{vanilla_vae_forward.1} parent=1 // pred_fallthru
      _
    // Predicated region
    $region14: #{vanilla_vae_forward.1} parent=1 // pred_check
      _
    $region15: #{vanilla_vae_forward.1} parent=1 // pred_check_branch
      %31 = sbr.rel (0) target = $region17
    $region16: #{vanilla_vae_forward.1} parent=1 // pred_region
      _
    $region17: #{vanilla_vae_forward.1} parent=1 // pred_fallthru
      _
    // Predicated region
    $region18: #{vanilla_vae_forward.1} parent=1 // pred_check
      _
    $region19: #{vanilla_vae_forward.1} parent=1 // pred_check_branch
      %33 = sbr.rel (0) target = $region21
    $region20: #{vanilla_vae_forward.1} parent=1 // pred_region
      %35 = dma.done [#allocation3], 20480
    $region21: #{vanilla_vae_forward.1} parent=1 // pred_fallthru
      _
    %v36 = vld [vmem:[%s3] sm:$0xff]
    %v37 = vld [vmem:[%s3 + $0x8] sm:$0xff]
    %v38 = vld [vmem:[%s0] sm:$0xff]
    %v39 = vld [vmem:[#allocation2] sm:$0xff]
    %v40 = vld [vmem:[#allocation2 + $0x8] sm:$0xff]
    %v41 = vld [vmem:[#allocation2 + $0x10] sm:$0xff]
    %v42 = vld [vmem:[#allocation2 + $0x18] sm:$0xff]
    %v43 = vld [vmem:[#allocation2 + $0x20] sm:$0xff]
    %v44 = vld [vmem:[#allocation2 + $0x28] sm:$0xff]
    %v45 = vld [vmem:[#allocation2 + $0x30] sm:$0xff]
    %v46 = vld [vmem:[#allocation2 + $0x38] sm:$0xff]
    %v47 = vld [vmem:[#allocation2 + $0x40] sm:$0xff]
    %v48 = vld [vmem:[#allocation2 + $0x48] sm:$0xff]
    %v49 = vld [vmem:[#allocation2 + $0x50] sm:$0xff]
    %v50 = vld [vmem:[#allocation2 + $0x58] sm:$0xff]
    %v51 = vld [vmem:[#allocation2 + $0x60] sm:$0xff]
    %v52 = vld [vmem:[#allocation2 + $0x68] sm:$0xff]
    %v53 = vld [vmem:[#allocation2 + $0x70] sm:$0xff]
    %v54 = vld [vmem:[#allocation2 + $0x78] sm:$0xff]
    %v55 = vpack.c.bf16 %v38, %v38
    %v56 = vperm.slane %v36, 0
    %v57 = vperm.slane %v37, 0
    %v74 = vunpack.c.l.b16 %v39
    %v75 = vunpack.c.h.b16 %v39
    %v76 = vunpack.c.l.b16 %v40
    %v77 = vunpack.c.h.b16 %v40
    %v78 = vunpack.c.l.b16 %v41
    %v79 = vunpack.c.h.b16 %v41
    %v80 = vunpack.c.l.b16 %v42
    %v81 = vunpack.c.h.b16 %v42
    %v82 = vunpack.c.l.b16 %v43
    %v83 = vunpack.c.h.b16 %v43
    %v84 = vunpack.c.l.b16 %v44
    %v85 = vunpack.c.h.b16 %v44
    %v86 = vunpack.c.l.b16 %v45
    %v87 = vunpack.c.h.b16 %v45
    %v88 = vunpack.c.l.b16 %v46
    %v89 = vunpack.c.h.b16 %v46
    %v90 = vunpack.c.l.b16 %v47
    %v91 = vunpack.c.h.b16 %v47
    %v92 = vunpack.c.l.b16 %v48
    %v93 = vunpack.c.h.b16 %v48
    %v94 = vunpack.c.l.b16 %v49
    %v95 = vunpack.c.h.b16 %v49
    %v96 = vunpack.c.l.b16 %v50
    %v97 = vunpack.c.h.b16 %v50
    %v98 = vunpack.c.l.b16 %v51
    %v99 = vunpack.c.h.b16 %v51
    %v100 = vunpack.c.l.b16 %v52
    %v101 = vunpack.c.h.b16 %v52
    %v102 = vunpack.c.l.b16 %v53
    %v103 = vunpack.c.h.b16 %v53
    %v104 = vunpack.c.l.b16 %v54
    %v105 = vunpack.c.h.b16 %v54
    %v106 = vpack.c.b16 %v76, %v74
    %v107 = vpack.c.b16 %v77, %v75
    %v108 = vpack.c.b16 %v80, %v78
    %v109 = vpack.c.b16 %v81, %v79
    %v110 = vpack.c.b16 %v84, %v82
    %v111 = vpack.c.b16 %v85, %v83
    %v112 = vpack.c.b16 %v88, %v86
    %v113 = vpack.c.b16 %v89, %v87
    %v114 = vpack.c.b16 %v92, %v90
    %v115 = vpack.c.b16 %v93, %v91
    %v116 = vpack.c.b16 %v96, %v94
    %v117 = vpack.c.b16 %v97, %v95
    %v118 = vpack.c.b16 %v100, %v98
    %v119 = vpack.c.b16 %v101, %v99
    %v120 = vpack.c.b16 %v104, %v102
    %v121 = vpack.c.b16 %v105, %v103
    %138 = vmatpush.bf16.msra.mxu0 %v120
    %139 = vmatpush.bf16.msra.mxu0 %v118
    %140 = vmatpush.bf16.msra.mxu0 %v116
    %141 = vmatpush.bf16.msra.mxu0 %v114
    %142 = vmatpush.bf16.msra.mxu0 %v112
    %143 = vmatpush.bf16.msra.mxu0 %v110
    %144 = vmatpush.bf16.msra.mxu0 %v108
    %145 = vmatpush.bf16.msra.mxu0 %v106
    %146 = vmatmul.bf16.gmra.mxu0 %v55
    %v147 = vpop.f32.mrf.mxu0
    %v148 = vadd.f32 %v56, %v147
    %v149 = vpop.f32.mrf.mxu0
    %150 = vdwg.mxu0
    %151 = vmatpush.bf16.msra.mxu0 %v121
    %152 = vmatpush.bf16.msra.mxu0 %v119
    %153 = vmatpush.bf16.msra.mxu0 %v117
    %154 = vmatpush.bf16.msra.mxu0 %v115
    %155 = vmatpush.bf16.msra.mxu0 %v113
    %156 = vmatpush.bf16.msra.mxu0 %v111
    %157 = vmatpush.bf16.msra.mxu0 %v109
    %158 = vmatpush.bf16.msra.mxu0 %v107
    %159 = vmatmul.bf16.gmra.mxu0 %v55
    %v160 = vpop.f32.mrf.mxu0
    %v161 = vadd.f32 %v57, %v160
    %v162 = vpop.f32.mrf.mxu0
    %163 = vdwg.mxu0
    %vm164 = vcmp.gt.f32.partialorder %v148, 0.0
    %vm165 = vcmp.gt.f32.partialorder %v161, 0.0
    %v166 = vmul.f32 %v148, 0.01
    %v167 = vmul.f32 %v161, 0.01
    %v168 = vsel %vm164, %v148, %v166
    %v169 = vsel %vm165, %v161, %v167
    %v170 = vpack.c.bf16 %v168, %v168
    %v171 = vpack.c.bf16 %v169, %v169
    %v172 = vld [vmem:[#allocation2 + $0x80] sm:$0xf]
    %v173 = vld [vmem:[#allocation2 + $0x88] sm:$0xf]
    %v174 = vld [vmem:[#allocation2 + $0x90] sm:$0xf]
    %v175 = vld [vmem:[#allocation2 + $0x98] sm:$0xf]
    %v176 = vld [vmem:[#allocation2 + $0xa0] sm:$0xf]
    %v177 = vld [vmem:[#allocation2 + $0xa8] sm:$0xf]
    %v178 = vld [vmem:[#allocation2 + $0xb0] sm:$0xf]
    %v179 = vld [vmem:[#allocation2 + $0xb8] sm:$0xf]
    %v180 = vld [vmem:[#allocation2 + $0xc0] sm:$0xf]
    %v181 = vld [vmem:[#allocation2 + $0xc8] sm:$0xf]
    %v182 = vld [vmem:[#allocation2 + $0xd0] sm:$0xf]
    %v183 = vld [vmem:[#allocation2 + $0xd8] sm:$0xf]
    %v184 = vld [vmem:[#allocation2 + $0xe0] sm:$0xf]
    %v185 = vld [vmem:[#allocation2 + $0xe8] sm:$0xf]
    %v186 = vld [vmem:[#allocation2 + $0xf0] sm:$0xf]
    %v187 = vld [vmem:[#allocation2 + $0xf8] sm:$0xf]
    %v188 = vld [vmem:[#allocation2 + $0x100] sm:$0xf]
    %v189 = vld [vmem:[#allocation2 + $0x108] sm:$0xf]
    %v190 = vld [vmem:[#allocation2 + $0x110] sm:$0xf]
    %v191 = vld [vmem:[#allocation2 + $0x118] sm:$0xf]
    %v192 = vld [vmem:[#allocation2 + $0x120] sm:$0xf]
    %v193 = vld [vmem:[#allocation2 + $0x128] sm:$0xf]
    %v194 = vld [vmem:[#allocation2 + $0x130] sm:$0xf]
    %v195 = vld [vmem:[#allocation2 + $0x138] sm:$0xf]
    %v196 = vld [vmem:[#allocation2 + $0x140] sm:$0xf]
    %v197 = vld [vmem:[#allocation2 + $0x148] sm:$0xf]
    %v198 = vld [vmem:[#allocation2 + $0x150] sm:$0xf]
    %v199 = vld [vmem:[#allocation2 + $0x158] sm:$0xf]
    %v200 = vld [vmem:[#allocation2 + $0x160] sm:$0xf]
    %v201 = vld [vmem:[#allocation2 + $0x168] sm:$0xf]
    %v202 = vld [vmem:[#allocation2 + $0x170] sm:$0xf]
    %v203 = vld [vmem:[#allocation2 + $0x178] sm:$0xf]
    %v204 = vperm.slane %v36, 1
    %v237 = vunpack.c.l.b16 %v172
    %v238 = vunpack.c.l.b16 %v173
    %v239 = vunpack.c.l.b16 %v174
    %v240 = vunpack.c.l.b16 %v175
    %v241 = vunpack.c.l.b16 %v176
    %v242 = vunpack.c.l.b16 %v177
    %v243 = vunpack.c.l.b16 %v178
    %v244 = vunpack.c.l.b16 %v179
    %v245 = vunpack.c.l.b16 %v180
    %v246 = vunpack.c.l.b16 %v181
    %v247 = vunpack.c.l.b16 %v182
    %v248 = vunpack.c.l.b16 %v183
    %v249 = vunpack.c.l.b16 %v184
    %v250 = vunpack.c.l.b16 %v185
    %v251 = vunpack.c.l.b16 %v186
    %v252 = vunpack.c.l.b16 %v187
    %v253 = vunpack.c.l.b16 %v188
    %v254 = vunpack.c.l.b16 %v189
    %v255 = vunpack.c.l.b16 %v190
    %v256 = vunpack.c.l.b16 %v191
    %v257 = vunpack.c.l.b16 %v192
    %v258 = vunpack.c.l.b16 %v193
    %v259 = vunpack.c.l.b16 %v194
    %v260 = vunpack.c.l.b16 %v195
    %v261 = vunpack.c.l.b16 %v196
    %v262 = vunpack.c.l.b16 %v197
    %v263 = vunpack.c.l.b16 %v198
    %v264 = vunpack.c.l.b16 %v199
    %v265 = vunpack.c.l.b16 %v200
    %v266 = vunpack.c.l.b16 %v201
    %v267 = vunpack.c.l.b16 %v202
    %v268 = vunpack.c.l.b16 %v203
    %v269 = vpack.c.b16 %v238, %v237
    %v270 = vpack.c.b16 %v240, %v239
    %v271 = vpack.c.b16 %v242, %v241
    %v272 = vpack.c.b16 %v244, %v243
    %v273 = vpack.c.b16 %v246, %v245
    %v274 = vpack.c.b16 %v248, %v247
    %v275 = vpack.c.b16 %v250, %v249
    %v276 = vpack.c.b16 %v252, %v251
    %v277 = vpack.c.b16 %v254, %v253
    %v278 = vpack.c.b16 %v256, %v255
    %v279 = vpack.c.b16 %v258, %v257
    %v280 = vpack.c.b16 %v260, %v259
    %v281 = vpack.c.b16 %v262, %v261
    %v282 = vpack.c.b16 %v264, %v263
    %v283 = vpack.c.b16 %v266, %v265
    %v284 = vpack.c.b16 %v268, %v267
    %301 = vmatpush.bf16.msra.mxu0 %v276
    %302 = vmatpush.bf16.msra.mxu0 %v275
    %303 = vmatpush.bf16.msra.mxu0 %v274
    %304 = vmatpush.bf16.msra.mxu0 %v273
    %305 = vmatpush.bf16.msra.mxu0 %v272
    %306 = vmatpush.bf16.msra.mxu0 %v271
    %307 = vmatpush.bf16.msra.mxu0 %v270
    %308 = vmatpush.bf16.msra.mxu0 %v269
    %309 = vmatmul.bf16.gmra.mxu0 %v170
    %v310 = vpop.f32.mrf.mxu0
    %v311 = vadd.f32 %v204, %v310
    %v312 = vpop.f32.mrf.mxu0
    %313 = vdwg.mxu0
    %314 = vmatpush.bf16.msra.mxu0 %v284
    %315 = vmatpush.bf16.msra.mxu0 %v283
    %316 = vmatpush.bf16.msra.mxu0 %v282
    %317 = vmatpush.bf16.msra.mxu0 %v281
    %318 = vmatpush.bf16.msra.mxu0 %v280
    %319 = vmatpush.bf16.msra.mxu0 %v279
    %320 = vmatpush.bf16.msra.mxu0 %v278
    %321 = vmatpush.bf16.msra.mxu0 %v277
    %322 = vmatmul.bf16.gmra.mxu0 %v171
    %v323 = vpop.f32.mrf.mxu0
    %v324 = vadd.f32 %v311, %v323
    %v325 = vpop.f32.mrf.mxu0
    %326 = vdwg.mxu0
    %vm327 = vcmp.gt.f32.partialorder %v324, 0.0
    %v328 = vmul.f32 %v324, 0.01
    %v329 = vsel %vm327, %v324, %v328
    %v330 = vpack.c.bf16 %v329, %v329
    %v331 = vld [vmem:[#allocation2 + $0x180] sm:$0xf]
    %v332 = vld [vmem:[#allocation2 + $0x188] sm:$0xf]
    %v333 = vld [vmem:[#allocation2 + $0x190] sm:$0xf]
    %v334 = vld [vmem:[#allocation2 + $0x198] sm:$0xf]
    %v335 = vld [vmem:[#allocation2 + $0x1a0] sm:$0xf]
    %v336 = vld [vmem:[#allocation2 + $0x1a8] sm:$0xf]
    %v337 = vld [vmem:[#allocation2 + $0x1b0] sm:$0xf]
    %v338 = vld [vmem:[#allocation2 + $0x1b8] sm:$0xf]
    %v339 = vld [vmem:[#allocation2 + $0x1c0] sm:$0xf]
    %v340 = vld [vmem:[#allocation2 + $0x1c8] sm:$0xf]
    %v341 = vld [vmem:[#allocation2 + $0x1d0] sm:$0xf]
    %v342 = vld [vmem:[#allocation2 + $0x1d8] sm:$0xf]
    %v343 = vld [vmem:[#allocation2 + $0x1e0] sm:$0xf]
    %v344 = vld [vmem:[#allocation2 + $0x1e8] sm:$0xf]
    %v345 = vld [vmem:[#allocation2 + $0x1f0] sm:$0xf]
    %v346 = vld [vmem:[#allocation2 + $0x1f8] sm:$0xf]
    %v347 = vperm.slane %v36, 2
    %v364 = vunpack.c.l.b16 %v331
    %v365 = vunpack.c.l.b16 %v332
    %v366 = vunpack.c.l.b16 %v333
    %v367 = vunpack.c.l.b16 %v334
    %v368 = vunpack.c.l.b16 %v335
    %v369 = vunpack.c.l.b16 %v336
    %v370 = vunpack.c.l.b16 %v337
    %v371 = vunpack.c.l.b16 %v338
    %v372 = vunpack.c.l.b16 %v339
    %v373 = vunpack.c.l.b16 %v340
    %v374 = vunpack.c.l.b16 %v341
    %v375 = vunpack.c.l.b16 %v342
    %v376 = vunpack.c.l.b16 %v343
    %v377 = vunpack.c.l.b16 %v344
    %v378 = vunpack.c.l.b16 %v345
    %v379 = vunpack.c.l.b16 %v346
    %v380 = vpack.c.b16 %v365, %v364
    %v381 = vpack.c.b16 %v367, %v366
    %v382 = vpack.c.b16 %v369, %v368
    %v383 = vpack.c.b16 %v371, %v370
    %v384 = vpack.c.b16 %v373, %v372
    %v385 = vpack.c.b16 %v375, %v374
    %v386 = vpack.c.b16 %v377, %v376
    %v387 = vpack.c.b16 %v379, %v378
    %396 = vmatpush.bf16.msra.mxu0 %v387
    %397 = vmatpush.bf16.msra.mxu0 %v386
    %398 = vmatpush.bf16.msra.mxu0 %v385
    %399 = vmatpush.bf16.msra.mxu0 %v384
    %400 = vmatpush.bf16.msra.mxu0 %v383
    %401 = vmatpush.bf16.msra.mxu0 %v382
    %402 = vmatpush.bf16.msra.mxu0 %v381
    %403 = vmatpush.bf16.msra.mxu0 %v380
    %404 = vmatmul.bf16.gmra.mxu0 %v330
    %v405 = vpop.f32.mrf.mxu0
    %v406 = vadd.f32 %v347, %v405
    %v407 = vpop.f32.mrf.mxu0
    %408 = vdwg.mxu0
    %v409 = vpack.c.bf16 %v406, %v406
    %v410 = vld [vmem:[#allocation2 + $0x200] sm:$0xff]
    %v411 = vld [vmem:[#allocation2 + $0x208] sm:$0xff]
    %v412 = vld [vmem:[#allocation2 + $0x210] sm:$0xff]
    %v413 = vld [vmem:[#allocation2 + $0x218] sm:$0xff]
    %v414 = vld [vmem:[#allocation2 + $0x220] sm:$0xff]
    %v415 = vld [vmem:[#allocation2 + $0x228] sm:$0xff]
    %v416 = vld [vmem:[#allocation2 + $0x230] sm:$0xff]
    %v417 = vld [vmem:[#allocation2 + $0x238] sm:$0xff]
    %v418 = vld [vmem:[#allocation2 + $0x240] sm:$0xff]
    %v419 = vld [vmem:[#allocation2 + $0x248] sm:$0xff]
    %v420 = vld [vmem:[#allocation2 + $0x250] sm:$0xff]
    %v421 = vld [vmem:[#allocation2 + $0x258] sm:$0xff]
    %v422 = vld [vmem:[#allocation2 + $0x260] sm:$0xff]
    %v423 = vld [vmem:[#allocation2 + $0x268] sm:$0xff]
    %v424 = vld [vmem:[#allocation2 + $0x270] sm:$0xff]
    %v425 = vld [vmem:[#allocation2 + $0x278] sm:$0xff]
    %v426 = vperm.slane %v36, 3
    %v427 = vperm.slane %v37, 3
    %v444 = vunpack.c.l.b16 %v410
    %v445 = vunpack.c.h.b16 %v410
    %v446 = vunpack.c.l.b16 %v411
    %v447 = vunpack.c.h.b16 %v411
    %v448 = vunpack.c.l.b16 %v412
    %v449 = vunpack.c.h.b16 %v412
    %v450 = vunpack.c.l.b16 %v413
    %v451 = vunpack.c.h.b16 %v413
    %v452 = vunpack.c.l.b16 %v414
    %v453 = vunpack.c.h.b16 %v414
    %v454 = vunpack.c.l.b16 %v415
    %v455 = vunpack.c.h.b16 %v415
    %v456 = vunpack.c.l.b16 %v416
    %v457 = vunpack.c.h.b16 %v416
    %v458 = vunpack.c.l.b16 %v417
    %v459 = vunpack.c.h.b16 %v417
    %v460 = vunpack.c.l.b16 %v418
    %v461 = vunpack.c.h.b16 %v418
    %v462 = vunpack.c.l.b16 %v419
    %v463 = vunpack.c.h.b16 %v419
    %v464 = vunpack.c.l.b16 %v420
    %v465 = vunpack.c.h.b16 %v420
    %v466 = vunpack.c.l.b16 %v421
    %v467 = vunpack.c.h.b16 %v421
    %v468 = vunpack.c.l.b16 %v422
    %v469 = vunpack.c.h.b16 %v422
    %v470 = vunpack.c.l.b16 %v423
    %v471 = vunpack.c.h.b16 %v423
    %v472 = vunpack.c.l.b16 %v424
    %v473 = vunpack.c.h.b16 %v424
    %v474 = vunpack.c.l.b16 %v425
    %v475 = vunpack.c.h.b16 %v425
    %v476 = vpack.c.b16 %v446, %v444
    %v477 = vpack.c.b16 %v447, %v445
    %v478 = vpack.c.b16 %v450, %v448
    %v479 = vpack.c.b16 %v451, %v449
    %v480 = vpack.c.b16 %v454, %v452
    %v481 = vpack.c.b16 %v455, %v453
    %v482 = vpack.c.b16 %v458, %v456
    %v483 = vpack.c.b16 %v459, %v457
    %v484 = vpack.c.b16 %v462, %v460
    %v485 = vpack.c.b16 %v463, %v461
    %v486 = vpack.c.b16 %v466, %v464
    %v487 = vpack.c.b16 %v467, %v465
    %v488 = vpack.c.b16 %v470, %v468
    %v489 = vpack.c.b16 %v471, %v469
    %v490 = vpack.c.b16 %v474, %v472
    %v491 = vpack.c.b16 %v475, %v473
    %508 = vmatpush.bf16.msra.mxu0 %v490
    %509 = vmatpush.bf16.msra.mxu0 %v488
    %510 = vmatpush.bf16.msra.mxu0 %v486
    %511 = vmatpush.bf16.msra.mxu0 %v484
    %512 = vmatpush.bf16.msra.mxu0 %v482
    %513 = vmatpush.bf16.msra.mxu0 %v480
    %514 = vmatpush.bf16.msra.mxu0 %v478
    %515 = vmatpush.bf16.msra.mxu0 %v476
    %516 = vmatmul.bf16.gmra.mxu0 %v409
    %v517 = vpop.f32.mrf.mxu0
    %v518 = vadd.f32 %v426, %v517
    %v519 = vpop.f32.mrf.mxu0
    %520 = vdwg.mxu0
    %521 = vmatpush.bf16.msra.mxu0 %v491
    %522 = vmatpush.bf16.msra.mxu0 %v489
    %523 = vmatpush.bf16.msra.mxu0 %v487
    %524 = vmatpush.bf16.msra.mxu0 %v485
    %525 = vmatpush.bf16.msra.mxu0 %v483
    %526 = vmatpush.bf16.msra.mxu0 %v481
    %527 = vmatpush.bf16.msra.mxu0 %v479
    %528 = vmatpush.bf16.msra.mxu0 %v477
    %529 = vmatmul.bf16.gmra.mxu0 %v409
    %v530 = vpop.f32.mrf.mxu0
    %v531 = vadd.f32 %v427, %v530
    %v532 = vpop.f32.mrf.mxu0
    %533 = vdwg.mxu0
    %534 = vst [vmem:[%s5] sm:$0xff] %v518
    %535 = vst [vmem:[%s5 + $0x8] sm:$0xff] %v531
    %v536 = vmul.f32 %v531, 0.5
    %v537 = vmul.f32 %v536, 1.442695
    %v538 = vpow.pop %v537
    %v539 = vld [vmem:[%s1] sm:$0xff]
    %v540 = vmul.f32 %v539, %v538
    %v541 = vadd.f32 %v540, %v518
    %v542 = vld [vmem:[#allocation2 + $0x280] sm:$0xf]
    %v543 = vld [vmem:[#allocation2 + $0x288] sm:$0xf]
    %v544 = vld [vmem:[#allocation2 + $0x290] sm:$0xf]
    %v545 = vld [vmem:[#allocation2 + $0x298] sm:$0xf]
    %v546 = vld [vmem:[#allocation2 + $0x2a0] sm:$0xf]
    %v547 = vld [vmem:[#allocation2 + $0x2a8] sm:$0xf]
    %v548 = vld [vmem:[#allocation2 + $0x2b0] sm:$0xf]
    %v549 = vld [vmem:[#allocation2 + $0x2b8] sm:$0xf]
    %v550 = vld [vmem:[#allocation2 + $0x2c0] sm:$0xf]
    %v551 = vld [vmem:[#allocation2 + $0x2c8] sm:$0xf]
    %v552 = vld [vmem:[#allocation2 + $0x2d0] sm:$0xf]
    %v553 = vld [vmem:[#allocation2 + $0x2d8] sm:$0xf]
    %v554 = vld [vmem:[#allocation2 + $0x2e0] sm:$0xf]
    %v555 = vld [vmem:[#allocation2 + $0x2e8] sm:$0xf]
    %v556 = vld [vmem:[#allocation2 + $0x2f0] sm:$0xf]
    %v557 = vld [vmem:[#allocation2 + $0x2f8] sm:$0xf]
    %v558 = vpack.c.bf16 %v541, %v541
    %v559 = vperm.slane %v36, 4
    %v576 = vunpack.c.l.b16 %v542
    %v577 = vunpack.c.l.b16 %v543
    %v578 = vunpack.c.l.b16 %v544
    %v579 = vunpack.c.l.b16 %v545
    %v580 = vunpack.c.l.b16 %v546
    %v581 = vunpack.c.l.b16 %v547
    %v582 = vunpack.c.l.b16 %v548
    %v583 = vunpack.c.l.b16 %v549
    %v584 = vunpack.c.l.b16 %v550
    %v585 = vunpack.c.l.b16 %v551
    %v586 = vunpack.c.l.b16 %v552
    %v587 = vunpack.c.l.b16 %v553
    %v588 = vunpack.c.l.b16 %v554
    %v589 = vunpack.c.l.b16 %v555
    %v590 = vunpack.c.l.b16 %v556
    %v591 = vunpack.c.l.b16 %v557
    %v592 = vpack.c.b16 %v577, %v576
    %v593 = vpack.c.b16 %v579, %v578
    %v594 = vpack.c.b16 %v581, %v580
    %v595 = vpack.c.b16 %v583, %v582
    %v596 = vpack.c.b16 %v585, %v584
    %v597 = vpack.c.b16 %v587, %v586
    %v598 = vpack.c.b16 %v589, %v588
    %v599 = vpack.c.b16 %v591, %v590
    %608 = vmatpush.bf16.msra.mxu0 %v599
    %609 = vmatpush.bf16.msra.mxu0 %v598
    %610 = vmatpush.bf16.msra.mxu0 %v597
    %611 = vmatpush.bf16.msra.mxu0 %v596
    %612 = vmatpush.bf16.msra.mxu0 %v595
    %613 = vmatpush.bf16.msra.mxu0 %v594
    %614 = vmatpush.bf16.msra.mxu0 %v593
    %615 = vmatpush.bf16.msra.mxu0 %v592
    %616 = vmatmul.bf16.gmra.mxu0 %v558
    %v617 = vpop.f32.mrf.mxu0
    %v618 = vadd.f32 %v559, %v617
    %v619 = vpop.f32.mrf.mxu0
    %620 = vdwg.mxu0
    %vm621 = vcmp.gt.f32.partialorder %v618, 0.0
    %v622 = vmul.f32 %v618, 0.01
    %v623 = vsel %vm621, %v618, %v622
    %v624 = vpack.c.bf16 %v623, %v623
    %v625 = vld [vmem:[#allocation2 + $0x300] sm:$0xf]
    %v626 = vld [vmem:[#allocation2 + $0x308] sm:$0xf]
    %v627 = vld [vmem:[#allocation2 + $0x310] sm:$0xf]
    %v628 = vld [vmem:[#allocation2 + $0x318] sm:$0xf]
    %v629 = vld [vmem:[#allocation2 + $0x320] sm:$0xf]
    %v630 = vld [vmem:[#allocation2 + $0x328] sm:$0xf]
    %v631 = vld [vmem:[#allocation2 + $0x330] sm:$0xf]
    %v632 = vld [vmem:[#allocation2 + $0x338] sm:$0xf]
    %v633 = vld [vmem:[#allocation2 + $0x340] sm:$0xf]
    %v634 = vld [vmem:[#allocation2 + $0x348] sm:$0xf]
    %v635 = vld [vmem:[#allocation2 + $0x350] sm:$0xf]
    %v636 = vld [vmem:[#allocation2 + $0x358] sm:$0xf]
    %v637 = vld [vmem:[#allocation2 + $0x360] sm:$0xf]
    %v638 = vld [vmem:[#allocation2 + $0x368] sm:$0xf]
    %v639 = vld [vmem:[#allocation2 + $0x370] sm:$0xf]
    %v640 = vld [vmem:[#allocation2 + $0x378] sm:$0xf]
    %v641 = vperm.slane %v36, 5
    %v658 = vunpack.c.l.b16 %v625
    %v659 = vunpack.c.l.b16 %v626
    %v660 = vunpack.c.l.b16 %v627
    %v661 = vunpack.c.l.b16 %v628
    %v662 = vunpack.c.l.b16 %v629
    %v663 = vunpack.c.l.b16 %v630
    %v664 = vunpack.c.l.b16 %v631
    %v665 = vunpack.c.l.b16 %v632
    %v666 = vunpack.c.l.b16 %v633
    %v667 = vunpack.c.l.b16 %v634
    %v668 = vunpack.c.l.b16 %v635
    %v669 = vunpack.c.l.b16 %v636
    %v670 = vunpack.c.l.b16 %v637
    %v671 = vunpack.c.l.b16 %v638
    %v672 = vunpack.c.l.b16 %v639
    %v673 = vunpack.c.l.b16 %v640
    %v674 = vpack.c.b16 %v659, %v658
    %v675 = vpack.c.b16 %v661, %v660
    %v676 = vpack.c.b16 %v663, %v662
    %v677 = vpack.c.b16 %v665, %v664
    %v678 = vpack.c.b16 %v667, %v666
    %v679 = vpack.c.b16 %v669, %v668
    %v680 = vpack.c.b16 %v671, %v670
    %v681 = vpack.c.b16 %v673, %v672
    %690 = vmatpush.bf16.msra.mxu0 %v681
    %691 = vmatpush.bf16.msra.mxu0 %v680
    %692 = vmatpush.bf16.msra.mxu0 %v679
    %693 = vmatpush.bf16.msra.mxu0 %v678
    %694 = vmatpush.bf16.msra.mxu0 %v677
    %695 = vmatpush.bf16.msra.mxu0 %v676
    %696 = vmatpush.bf16.msra.mxu0 %v675
    %697 = vmatpush.bf16.msra.mxu0 %v674
    %698 = vmatmul.bf16.gmra.mxu0 %v624
    %v699 = vpop.f32.mrf.mxu0
    %v700 = vadd.f32 %v641, %v699
    %v701 = vpop.f32.mrf.mxu0
    %702 = vdwg.mxu0
    %vm703 = vcmp.gt.f32.partialorder %v700, 0.0
    %v704 = vmul.f32 %v700, 0.01
    %v705 = vsel %vm703, %v700, %v704
    %v706 = vpack.c.bf16 %v705, %v705
    %v707 = vld [vmem:[#allocation2 + $0x380] sm:$0xff]
    %v708 = vld [vmem:[#allocation2 + $0x388] sm:$0xff]
    %v709 = vld [vmem:[#allocation2 + $0x390] sm:$0xff]
    %v710 = vld [vmem:[#allocation2 + $0x398] sm:$0xff]
    %v711 = vld [vmem:[#allocation2 + $0x3a0] sm:$0xff]
    %v712 = vld [vmem:[#allocation2 + $0x3a8] sm:$0xff]
    %v713 = vld [vmem:[#allocation2 + $0x3b0] sm:$0xff]
    %v714 = vld [vmem:[#allocation2 + $0x3b8] sm:$0xff]
    %v715 = vld [vmem:[#allocation2 + $0x3c0] sm:$0xff]
    %v716 = vld [vmem:[#allocation2 + $0x3c8] sm:$0xff]
    %v717 = vld [vmem:[#allocation2 + $0x3d0] sm:$0xff]
    %v718 = vld [vmem:[#allocation2 + $0x3d8] sm:$0xff]
    %v719 = vld [vmem:[#allocation2 + $0x3e0] sm:$0xff]
    %v720 = vld [vmem:[#allocation2 + $0x3e8] sm:$0xff]
    %v721 = vld [vmem:[#allocation2 + $0x3f0] sm:$0xff]
    %v722 = vld [vmem:[#allocation2 + $0x3f8] sm:$0xff]
    %v723 = vperm.slane %v36, 6
    %v724 = vperm.slane %v37, 6
    %v741 = vunpack.c.l.b16 %v707
    %v742 = vunpack.c.h.b16 %v707
    %v743 = vunpack.c.l.b16 %v708
    %v744 = vunpack.c.h.b16 %v708
    %v745 = vunpack.c.l.b16 %v709
    %v746 = vunpack.c.h.b16 %v709
    %v747 = vunpack.c.l.b16 %v710
    %v748 = vunpack.c.h.b16 %v710
    %v749 = vunpack.c.l.b16 %v711
    %v750 = vunpack.c.h.b16 %v711
    %v751 = vunpack.c.l.b16 %v712
    %v752 = vunpack.c.h.b16 %v712
    %v753 = vunpack.c.l.b16 %v713
    %v754 = vunpack.c.h.b16 %v713
    %v755 = vunpack.c.l.b16 %v714
    %v756 = vunpack.c.h.b16 %v714
    %v757 = vunpack.c.l.b16 %v715
    %v758 = vunpack.c.h.b16 %v715
    %v759 = vunpack.c.l.b16 %v716
    %v760 = vunpack.c.h.b16 %v716
    %v761 = vunpack.c.l.b16 %v717
    %v762 = vunpack.c.h.b16 %v717
    %v763 = vunpack.c.l.b16 %v718
    %v764 = vunpack.c.h.b16 %v718
    %v765 = vunpack.c.l.b16 %v719
    %v766 = vunpack.c.h.b16 %v719
    %v767 = vunpack.c.l.b16 %v720
    %v768 = vunpack.c.h.b16 %v720
    %v769 = vunpack.c.l.b16 %v721
    %v770 = vunpack.c.h.b16 %v721
    %v771 = vunpack.c.l.b16 %v722
    %v772 = vunpack.c.h.b16 %v722
    %v773 = vpack.c.b16 %v743, %v741
    %v774 = vpack.c.b16 %v744, %v742
    %v775 = vpack.c.b16 %v747, %v745
    %v776 = vpack.c.b16 %v748, %v746
    %v777 = vpack.c.b16 %v751, %v749
    %v778 = vpack.c.b16 %v752, %v750
    %v779 = vpack.c.b16 %v755, %v753
    %v780 = vpack.c.b16 %v756, %v754
    %v781 = vpack.c.b16 %v759, %v757
    %v782 = vpack.c.b16 %v760, %v758
    %v783 = vpack.c.b16 %v763, %v761
    %v784 = vpack.c.b16 %v764, %v762
    %v785 = vpack.c.b16 %v767, %v765
    %v786 = vpack.c.b16 %v768, %v766
    %v787 = vpack.c.b16 %v771, %v769
    %v788 = vpack.c.b16 %v772, %v770
    %805 = vmatpush.bf16.msra.mxu0 %v787
    %806 = vmatpush.bf16.msra.mxu0 %v785
    %807 = vmatpush.bf16.msra.mxu0 %v783
    %808 = vmatpush.bf16.msra.mxu0 %v781
    %809 = vmatpush.bf16.msra.mxu0 %v779
    %810 = vmatpush.bf16.msra.mxu0 %v777
    %811 = vmatpush.bf16.msra.mxu0 %v775
    %812 = vmatpush.bf16.msra.mxu0 %v773
    %813 = vmatmul.bf16.gmra.mxu0 %v706
    %v814 = vpop.f32.mrf.mxu0
    %v815 = vadd.f32 %v723, %v814
    %v816 = vpop.f32.mrf.mxu0
    %817 = vdwg.mxu0
    %818 = vmatpush.bf16.msra.mxu0 %v788
    %819 = vmatpush.bf16.msra.mxu0 %v786
    %820 = vmatpush.bf16.msra.mxu0 %v784
    %821 = vmatpush.bf16.msra.mxu0 %v782
    %822 = vmatpush.bf16.msra.mxu0 %v780
    %823 = vmatpush.bf16.msra.mxu0 %v778
    %824 = vmatpush.bf16.msra.mxu0 %v776
    %825 = vmatpush.bf16.msra.mxu0 %v774
    %826 = vmatmul.bf16.gmra.mxu0 %v706
    %v827 = vpop.f32.mrf.mxu0
    %v828 = vadd.f32 %v724, %v827
    %v829 = vpop.f32.mrf.mxu0
    %830 = vdwg.mxu0
    %vm831 = vcmp.gt.f32.partialorder %v815, 0.0
    %vm832 = vcmp.gt.f32.partialorder %v828, 0.0
    %v833 = vmul.f32 %v815, 0.01
    %v834 = vmul.f32 %v828, 0.01
    %v835 = vsel %vm831, %v815, %v833
    %v836 = vsel %vm832, %v828, %v834
    %v837 = vpack.c.bf16 %v835, %v835
    %v838 = vpack.c.bf16 %v836, %v836
    %v839 = vld [vmem:[#allocation2 + $0x400] sm:$0xf]
    %v840 = vld [vmem:[#allocation2 + $0x408] sm:$0xf]
    %v841 = vld [vmem:[#allocation2 + $0x410] sm:$0xf]
    %v842 = vld [vmem:[#allocation2 + $0x418] sm:$0xf]
    %v843 = vld [vmem:[#allocation2 + $0x420] sm:$0xf]
    %v844 = vld [vmem:[#allocation2 + $0x428] sm:$0xf]
    %v845 = vld [vmem:[#allocation2 + $0x430] sm:$0xf]
    %v846 = vld [vmem:[#allocation2 + $0x438] sm:$0xf]
    %v847 = vld [vmem:[#allocation2 + $0x440] sm:$0xf]
    %v848 = vld [vmem:[#allocation2 + $0x448] sm:$0xf]
    %v849 = vld [vmem:[#allocation2 + $0x450] sm:$0xf]
    %v850 = vld [vmem:[#allocation2 + $0x458] sm:$0xf]
    %v851 = vld [vmem:[#allocation2 + $0x460] sm:$0xf]
    %v852 = vld [vmem:[#allocation2 + $0x468] sm:$0xf]
    %v853 = vld [vmem:[#allocation2 + $0x470] sm:$0xf]
    %v854 = vld [vmem:[#allocation2 + $0x478] sm:$0xf]
    %v855 = vld [vmem:[#allocation2 + $0x480] sm:$0xf]
    %v856 = vld [vmem:[#allocation2 + $0x488] sm:$0xf]
    %v857 = vld [vmem:[#allocation2 + $0x490] sm:$0xf]
    %v858 = vld [vmem:[#allocation2 + $0x498] sm:$0xf]
    %v859 = vld [vmem:[#allocation2 + $0x4a0] sm:$0xf]
    %v860 = vld [vmem:[#allocation2 + $0x4a8] sm:$0xf]
    %v861 = vld [vmem:[#allocation2 + $0x4b0] sm:$0xf]
    %v862 = vld [vmem:[#allocation2 + $0x4b8] sm:$0xf]
    %v863 = vld [vmem:[#allocation2 + $0x4c0] sm:$0xf]
    %v864 = vld [vmem:[#allocation2 + $0x4c8] sm:$0xf]
    %v865 = vld [vmem:[#allocation2 + $0x4d0] sm:$0xf]
    %v866 = vld [vmem:[#allocation2 + $0x4d8] sm:$0xf]
    %v867 = vld [vmem:[#allocation2 + $0x4e0] sm:$0xf]
    %v868 = vld [vmem:[#allocation2 + $0x4e8] sm:$0xf]
    %v869 = vld [vmem:[#allocation2 + $0x4f0] sm:$0xf]
    %v870 = vld [vmem:[#allocation2 + $0x4f8] sm:$0xf]
    %v871 = vperm.slane %v36, 7
    %v904 = vunpack.c.l.b16 %v839
    %v905 = vunpack.c.l.b16 %v840
    %v906 = vunpack.c.l.b16 %v841
    %v907 = vunpack.c.l.b16 %v842
    %v908 = vunpack.c.l.b16 %v843
    %v909 = vunpack.c.l.b16 %v844
    %v910 = vunpack.c.l.b16 %v845
    %v911 = vunpack.c.l.b16 %v846
    %v912 = vunpack.c.l.b16 %v847
    %v913 = vunpack.c.l.b16 %v848
    %v914 = vunpack.c.l.b16 %v849
    %v915 = vunpack.c.l.b16 %v850
    %v916 = vunpack.c.l.b16 %v851
    %v917 = vunpack.c.l.b16 %v852
    %v918 = vunpack.c.l.b16 %v853
    %v919 = vunpack.c.l.b16 %v854
    %v920 = vunpack.c.l.b16 %v855
    %v921 = vunpack.c.l.b16 %v856
    %v922 = vunpack.c.l.b16 %v857
    %v923 = vunpack.c.l.b16 %v858
    %v924 = vunpack.c.l.b16 %v859
    %v925 = vunpack.c.l.b16 %v860
    %v926 = vunpack.c.l.b16 %v861
    %v927 = vunpack.c.l.b16 %v862
    %v928 = vunpack.c.l.b16 %v863
    %v929 = vunpack.c.l.b16 %v864
    %v930 = vunpack.c.l.b16 %v865
    %v931 = vunpack.c.l.b16 %v866
    %v932 = vunpack.c.l.b16 %v867
    %v933 = vunpack.c.l.b16 %v868
    %v934 = vunpack.c.l.b16 %v869
    %v935 = vunpack.c.l.b16 %v870
    %v936 = vpack.c.b16 %v905, %v904
    %v937 = vpack.c.b16 %v907, %v906
    %v938 = vpack.c.b16 %v909, %v908
    %v939 = vpack.c.b16 %v911, %v910
    %v940 = vpack.c.b16 %v913, %v912
    %v941 = vpack.c.b16 %v915, %v914
    %v942 = vpack.c.b16 %v917, %v916
    %v943 = vpack.c.b16 %v919, %v918
    %v944 = vpack.c.b16 %v921, %v920
    %v945 = vpack.c.b16 %v923, %v922
    %v946 = vpack.c.b16 %v925, %v924
    %v947 = vpack.c.b16 %v927, %v926
    %v948 = vpack.c.b16 %v929, %v928
    %v949 = vpack.c.b16 %v931, %v930
    %v950 = vpack.c.b16 %v933, %v932
    %v951 = vpack.c.b16 %v935, %v934
    %968 = vmatpush.bf16.msra.mxu0 %v943
    %969 = vmatpush.bf16.msra.mxu0 %v942
    %970 = vmatpush.bf16.msra.mxu0 %v941
    %971 = vmatpush.bf16.msra.mxu0 %v940
    %972 = vmatpush.bf16.msra.mxu0 %v939
    %973 = vmatpush.bf16.msra.mxu0 %v938
    %974 = vmatpush.bf16.msra.mxu0 %v937
    %975 = vmatpush.bf16.msra.mxu0 %v936
    %976 = vmatmul.bf16.gmra.mxu0 %v837
    %v977 = vpop.f32.mrf.mxu0
    %v978 = vadd.f32 %v871, %v977
    %v979 = vpop.f32.mrf.mxu0
    %980 = vdwg.mxu0
    %981 = vmatpush.bf16.msra.mxu0 %v951
    %982 = vmatpush.bf16.msra.mxu0 %v950
    %983 = vmatpush.bf16.msra.mxu0 %v949
    %984 = vmatpush.bf16.msra.mxu0 %v948
    %985 = vmatpush.bf16.msra.mxu0 %v947
    %986 = vmatpush.bf16.msra.mxu0 %v946
    %987 = vmatpush.bf16.msra.mxu0 %v945
    %988 = vmatpush.bf16.msra.mxu0 %v944
    %989 = vmatmul.bf16.gmra.mxu0 %v838
    %v990 = vpop.f32.mrf.mxu0
    %v991 = vadd.f32 %v978, %v990
    %v992 = vpop.f32.mrf.mxu0
    %993 = vdwg.mxu0
    %994 = vst [vmem:[#allocation5] sm:$0xff] %v991
    // Predicated region
    $region22: #{vanilla_vae_forward.1} parent=1 // pred_check
      _
    $region23: #{vanilla_vae_forward.1} parent=1 // pred_check_branch
      %996 = sbr.rel (0) target = $region25
    $region24: #{vanilla_vae_forward.1} parent=1 // pred_region
      %998 = vsyncadd [#allocation4], 0
      %s1000 = sshll.u32 [#allocation5], 4
      %s1001 = int_to_ptr.vmem [resolvable:$true] %s1000
      %s1002 = sshll.u32 %s4, 4
      %s1003 = int_to_ptr.hbm [resolvable:$true] %s1002
      %1005 = dma.vmem_to_hbm [thread:$0]  %s1001, 128, %s1003, [#allocation4]
    $region25: #{vanilla_vae_forward.1} parent=1 // pred_fallthru
      _
    // Predicated region
    $region26: #{vanilla_vae_forward.1} parent=1 // pred_check
      _
    $region27: #{vanilla_vae_forward.1} parent=1 // pred_check_branch
      %1007 = sbr.rel (0) target = $region29
    $region28: #{vanilla_vae_forward.1} parent=1 // pred_region
      _
    $region29: #{vanilla_vae_forward.1} parent=1 // pred_fallthru
      _
    // Predicated region
    $region30: #{vanilla_vae_forward.1} parent=1 // pred_check
      _
    $region31: #{vanilla_vae_forward.1} parent=1 // pred_check_branch
      %1009 = sbr.rel (0) target = $region33
    $region32: #{vanilla_vae_forward.1} parent=1 // pred_region
      %1011 = dma.done [#allocation4], 128
    $region33: #{vanilla_vae_forward.1} parent=1 // pred_fallthru
      _
    // Predicated region
    $region34: #{vanilla_vae_forward.1} parent=1 // pred_check
      _
    $region35: #{vanilla_vae_forward.1} parent=1 // pred_check_branch
      %1013 = sbr.rel (0) target = $region37
    $region36: #{vanilla_vae_forward.1} parent=1 // pred_region
      _
    $region37: #{vanilla_vae_forward.1} parent=1 // pred_fallthru
      _
    %1014 = vsyncpa [#allocation3], 1
    %1015 = vsyncpa [#allocation4], 1

</llo_original>
